<compile_context>
chip_gen: v5e
topology: v5e:2x2
jax: 0.10.0
libtpu: 0.0.40
codegen_flags: <defaults>
</compile_context>

<pallas_src>
import jax
import jax.numpy as jnp
from jax.experimental import pallas as pl
from jax.experimental.pallas import tpu as pltpu


def _round_up(x, m):
    return ((x + m - 1) // m) * m


def siamese_mlp_kernel(xq_ref, xs_ref, w1q_ref, w1s_ref, b1_ref,
                       w2_ref, b2_ref, w3_ref, b3_ref, o_ref):
    # xq/xs: (TB, D) bf16 activation tiles; weights bf16; biases f32.
    # Layer 1: fused "concat" matmul, f32 accumulation on the MXU.
    h1 = (jnp.dot(xq_ref[...], w1q_ref[...], preferred_element_type=jnp.float32)
          + jnp.dot(xs_ref[...], w1s_ref[...], preferred_element_type=jnp.float32))
    h1 = jnp.maximum(h1 + b1_ref[...], 0.0)           # ReLU (Dropout = identity)

    # Layer 2: bf16 operands, f32 accumulation.
    h2 = jnp.dot(h1.astype(jnp.bfloat16), w2_ref[...],
                 preferred_element_type=jnp.float32)
    h2 = jnp.maximum(h2 + b2_ref[...], 0.0)           # ReLU (Dropout = identity)

    # Layer 3 (N=1): VPU multiply + lane reduction instead of a degenerate
    # MXU matmul.  w3_ref is the (1, 64) weight row, b3_ref is (1, 1).
    logit = jnp.sum(h2 * w3_ref[...], axis=-1, keepdims=True) + b3_ref[...]

    o_ref[...] = jax.nn.sigmoid(logit)                # Sigmoid (EUP)


def siamese_forward(query_embedding, snippet_embedding, params, *,
                    block_batch=256):
    """query/snippet: (B, D) float32.  Returns (B, 1) float32 in [0, 1]."""
    w1, b1, w2, b2, w3, b3 = params
    B, D = query_embedding.shape

    # Split the first-layer weight so no (B, 2D) concat is ever materialized.
    w1_q = w1[:D].astype(jnp.bfloat16)                # (D, 128)
    w1_s = w1[D:].astype(jnp.bfloat16)                # (D, 128)
    w2_b = w2.astype(jnp.bfloat16)                    # (128, 64)
    w3_row = w3.reshape(1, 64).astype(jnp.float32)    # (1, 64)
    b3_sc = b3.reshape(1, 1).astype(jnp.float32)      # (1, 1)

    xq = query_embedding.astype(jnp.bfloat16)
    xs = snippet_embedding.astype(jnp.bfloat16)

    # Batch tile: multiple of 8 (sublane), capped by block_batch; pad B up so
    # every grid step sees a full tile (padded rows sliced off afterwards).
    TB = min(block_batch, _round_up(B, 8))
    Bp = _round_up(B, TB)
    if Bp != B:
        pad = ((0, Bp - B), (0, 0))
        xq = jnp.pad(xq, pad)
        xs = jnp.pad(xs, pad)
    grid = (Bp // TB,)

    x_spec = pl.BlockSpec((TB, D), lambda i: (i, 0))
    const = lambda shape: pl.BlockSpec(shape, lambda i: (0,) * len(shape))

    flops = 2 * Bp * (2 * D) * 128 + 2 * Bp * 128 * 64 + 2 * Bp * 64
    bytes_accessed = (2 * Bp * D * 2                      # activation streams (bf16)
                      + (2 * D * 128 + 128 * 64) * 2      # bf16 weights
                      + (128 + 64 + 64 + 1) * 4           # f32 biases + w3 row
                      + Bp * 4)                           # output
    cost = pl.CostEstimate(flops=flops, transcendentals=Bp,
                           bytes_accessed=bytes_accessed)

    out = pl.pallas_call(
        siamese_mlp_kernel,
        out_shape=jax.ShapeDtypeStruct((Bp, 1), jnp.float32),
        grid=grid,
        in_specs=[
            x_spec, x_spec,
            const(w1_q.shape), const(w1_s.shape), const(b1.shape),
            const(w2_b.shape), const(b2.shape),
            const(w3_row.shape), const(b3_sc.shape),
        ],
        out_specs=pl.BlockSpec((TB, 1), lambda i: (i, 0)),
        compiler_params=pltpu.CompilerParams(
            dimension_semantics=("parallel",)),
        cost_estimate=cost,
    )(xq, xs, w1_q, w1_s, b1, w2_b, b2, w3_row, b3_sc)

    return out[:B]


def init_params(embedding_dim, key):
    """Deterministic init matching nn.Linear default (U[-1/sqrt(fan_in), +])."""
    dims = [(embedding_dim * 2, 128), (128, 64), (64, 1)]
    params = []
    for i, (fan_in, fan_out) in enumerate(dims):
        kw, kb = jax.random.split(jax.random.fold_in(key, i))
        bound = 1.0 / jnp.sqrt(jnp.float32(fan_in))
        w = jax.random.uniform(kw, (fan_in, fan_out), jnp.float32,
                               minval=-bound, maxval=bound)
        b = jax.random.uniform(kb, (1, fan_out), jnp.float32,
                               minval=-bound, maxval=bound)
        params.extend([w, b])
    return tuple(params)


if __name__ == "__main__":
    # Small synthetic shapes: batch=8, embedding_dim=32 (stand-in for MiniLM's 384).
    B, D = 8, 32
    key = jax.random.PRNGKey(0)
    k_q, k_s, k_p = jax.random.split(key, 3)

    query_embedding = jax.random.normal(k_q, (B, D), jnp.float32)
    snippet_embedding = jax.random.normal(k_s, (B, D), jnp.float32)
    params = init_params(D, k_p)

    out = siamese_forward(query_embedding, snippet_embedding, params)
    out = jax.block_until_ready(out)

    assert out.shape == (B, 1) and out.dtype == jnp.float32
    assert bool(jnp.all((out >= 0.0) & (out <= 1.0)))
    print("KERNEL_OK")
</pallas_src>

<mosaic_0001>
module attributes {stable_mosaic.version = 11 : i64} {
  func.func @siamese_mlp_kernel(%arg0: i32, %arg1: memref<8x32xbf16, #tpu.memory_space<vmem>>, %arg2: memref<8x32xbf16, #tpu.memory_space<vmem>>, %arg3: memref<32x128xbf16, #tpu.memory_space<vmem>>, %arg4: memref<32x128xbf16, #tpu.memory_space<vmem>>, %arg5: memref<1x128xf32, #tpu.memory_space<vmem>>, %arg6: memref<128x64xbf16, #tpu.memory_space<vmem>>, %arg7: memref<1x64xf32, #tpu.memory_space<vmem>>, %arg8: memref<1x64xf32, #tpu.memory_space<vmem>>, %arg9: memref<1x1xf32, #tpu.memory_space<vmem>>, %arg10: memref<8x1xf32, #tpu.memory_space<vmem>>) attributes {dimension_semantics = [#tpu.dimension_semantics<parallel>], iteration_bounds = array<i64: 1>, scalar_prefetch = 0 : i64, scratch_operands = 0 : i64, tpu.core_type = #tpu.core_type<tc>, window_params = [{transform_indices = @transform_0, window_bounds = array<i64: 8, 32>}, {transform_indices = @transform_1, window_bounds = array<i64: 8, 32>}, {pipeline_mode = #tpu.pipeline_mode<synchronous>, transform_indices = @transform_2, window_bounds = array<i64: 32, 128>}, {pipeline_mode = #tpu.pipeline_mode<synchronous>, transform_indices = @transform_3, window_bounds = array<i64: 32, 128>}, {pipeline_mode = #tpu.pipeline_mode<synchronous>, transform_indices = @transform_4, window_bounds = array<i64: 1, 128>}, {pipeline_mode = #tpu.pipeline_mode<synchronous>, transform_indices = @transform_5, window_bounds = array<i64: 128, 64>}, {pipeline_mode = #tpu.pipeline_mode<synchronous>, transform_indices = @transform_6, window_bounds = array<i64: 1, 64>}, {pipeline_mode = #tpu.pipeline_mode<synchronous>, transform_indices = @transform_7, window_bounds = array<i64: 1, 64>}, {pipeline_mode = #tpu.pipeline_mode<synchronous>, transform_indices = @transform_8, window_bounds = array<i64: 1, 1>}, {transform_indices = @transform_9, window_bounds = array<i64: 8, 1>}]} {
    %c0 = arith.constant 0 : index
    %c0_0 = arith.constant 0 : index
    %0 = vector.load %arg1[%c0, %c0_0] : memref<8x32xbf16, #tpu.memory_space<vmem>>, vector<8x32xbf16>
    %c0_1 = arith.constant 0 : index
    %c0_2 = arith.constant 0 : index
    %1 = vector.load %arg3[%c0_1, %c0_2] : memref<32x128xbf16, #tpu.memory_space<vmem>>, vector<32x128xbf16>
    %cst = arith.constant dense<0.000000e+00> : vector<8x128xf32>
    %2 = tpu.matmul %0, %1, %cst {dimension_numbers = #tpu.dot_dimension_numbers<[1], [0], [0], [1], [0, 0, 1, 1], [], []>} : vector<8x32xbf16>, vector<32x128xbf16>, vector<8x128xf32> -> vector<8x128xf32>
    %c0_3 = arith.constant 0 : index
    %c0_4 = arith.constant 0 : index
    %3 = vector.load %arg2[%c0_3, %c0_4] : memref<8x32xbf16, #tpu.memory_space<vmem>>, vector<8x32xbf16>
    %c0_5 = arith.constant 0 : index
    %c0_6 = arith.constant 0 : index
    %4 = vector.load %arg4[%c0_5, %c0_6] : memref<32x128xbf16, #tpu.memory_space<vmem>>, vector<32x128xbf16>
    %cst_7 = arith.constant dense<0.000000e+00> : vector<8x128xf32>
    %5 = tpu.matmul %3, %4, %cst_7 {dimension_numbers = #tpu.dot_dimension_numbers<[1], [0], [0], [1], [0, 0, 1, 1], [], []>} : vector<8x32xbf16>, vector<32x128xbf16>, vector<8x128xf32> -> vector<8x128xf32>
    %6 = arith.addf %2, %5 : vector<8x128xf32>
    %c0_8 = arith.constant 0 : index
    %c0_9 = arith.constant 0 : index
    %7 = vector.load %arg5[%c0_8, %c0_9] : memref<1x128xf32, #tpu.memory_space<vmem>>, vector<1x128xf32>
    %8 = vector.broadcast %7 : vector<1x128xf32> to vector<8x128xf32>
    %9 = arith.addf %6, %8 : vector<8x128xf32>
    %cst_10 = arith.constant 0.000000e+00 : f32
    %10 = vector.broadcast %cst_10 : f32 to vector<8x128xf32>
    %11 = arith.maximumf %9, %10 : vector<8x128xf32>
    %12 = arith.truncf %11 : vector<8x128xf32> to vector<8x128xbf16>
    %c0_11 = arith.constant 0 : index
    %c0_12 = arith.constant 0 : index
    %13 = vector.load %arg6[%c0_11, %c0_12] : memref<128x64xbf16, #tpu.memory_space<vmem>>, vector<128x64xbf16>
    %cst_13 = arith.constant dense<0.000000e+00> : vector<8x64xf32>
    %14 = tpu.matmul %12, %13, %cst_13 {dimension_numbers = #tpu.dot_dimension_numbers<[1], [0], [0], [1], [0, 0, 1, 1], [], []>} : vector<8x128xbf16>, vector<128x64xbf16>, vector<8x64xf32> -> vector<8x64xf32>
    %c0_14 = arith.constant 0 : index
    %c0_15 = arith.constant 0 : index
    %15 = vector.load %arg7[%c0_14, %c0_15] : memref<1x64xf32, #tpu.memory_space<vmem>>, vector<1x64xf32>
    %16 = vector.broadcast %15 : vector<1x64xf32> to vector<8x64xf32>
    %17 = arith.addf %14, %16 : vector<8x64xf32>
    %cst_16 = arith.constant 0.000000e+00 : f32
    %18 = vector.broadcast %cst_16 : f32 to vector<8x64xf32>
    %19 = arith.maximumf %17, %18 : vector<8x64xf32>
    %c0_17 = arith.constant 0 : index
    %c0_18 = arith.constant 0 : index
    %20 = vector.load %arg8[%c0_17, %c0_18] : memref<1x64xf32, #tpu.memory_space<vmem>>, vector<1x64xf32>
    %21 = vector.broadcast %20 : vector<1x64xf32> to vector<8x64xf32>
    %22 = arith.mulf %19, %21 : vector<8x64xf32>
    %cst_19 = arith.constant dense<0.000000e+00> : vector<8xf32>
    %23 = vector.multi_reduction <add>, %22, %cst_19 [1] : vector<8x64xf32> to vector<8xf32>
    %24 = vector.shape_cast %23 : vector<8xf32> to vector<8x1xf32>
    %c0_20 = arith.constant 0 : index
    %c0_21 = arith.constant 0 : index
    %25 = vector.load %arg9[%c0_20, %c0_21] : memref<1x1xf32, #tpu.memory_space<vmem>>, vector<1x1xf32>
    %26 = vector.broadcast %25 : vector<1x1xf32> to vector<8x1xf32>
    %27 = arith.addf %24, %26 : vector<8x1xf32>
    %28 = arith.negf %27 : vector<8x1xf32>
    %29 = math.exp %28 : vector<8x1xf32>
    %cst_22 = arith.constant 1.000000e+00 : f32
    %30 = vector.broadcast %cst_22 : f32 to vector<8x1xf32>
    %31 = arith.addf %30, %29 : vector<8x1xf32>
    %32 = arith.divf %30, %31 : vector<8x1xf32>
    %c0_23 = arith.constant 0 : index
    %c0_24 = arith.constant 0 : index
    %33 = vector.load %arg10[%c0_23, %c0_24] : memref<8x1xf32, #tpu.memory_space<vmem>>, vector<8x1xf32>
    tpu.vector_store %arg10[%c0_23, %c0_24], %32 {strides = array<i32>} : memref<8x1xf32, #tpu.memory_space<vmem>>, vector<8x1xf32>,
    return
  }
  func.func @transform_0(%arg0: i32) -> (i32, i32) {
    %c0_i32 = arith.constant 0 : i32
    %c0_i32_0 = arith.constant 0 : i32
    return %arg0, %c0_i32 : i32, i32
  }
  func.func @transform_1(%arg0: i32) -> (i32, i32) {
    %c0_i32 = arith.constant 0 : i32
    %c0_i32_0 = arith.constant 0 : i32
    return %arg0, %c0_i32 : i32, i32
  }
  func.func @transform_2(%arg0: i32) -> (i32, i32) {
    %c0_i32 = arith.constant 0 : i32
    %c0_i32_0 = arith.constant 0 : i32
    %c0_i32_1 = arith.constant 0 : i32
    return %c0_i32, %c0_i32_0 : i32, i32
  }
  func.func @transform_3(%arg0: i32) -> (i32, i32) {
    %c0_i32 = arith.constant 0 : i32
    %c0_i32_0 = arith.constant 0 : i32
    %c0_i32_1 = arith.constant 0 : i32
    return %c0_i32, %c0_i32_0 : i32, i32
  }
  func.func @transform_4(%arg0: i32) -> (i32, i32) {
    %c0_i32 = arith.constant 0 : i32
    %c0_i32_0 = arith.constant 0 : i32
    %c0_i32_1 = arith.constant 0 : i32
    return %c0_i32, %c0_i32_0 : i32, i32
  }
  func.func @transform_5(%arg0: i32) -> (i32, i32) {
    %c0_i32 = arith.constant 0 : i32
    %c0_i32_0 = arith.constant 0 : i32
    %c0_i32_1 = arith.constant 0 : i32
    return %c0_i32, %c0_i32_0 : i32, i32
  }
  func.func @transform_6(%arg0: i32) -> (i32, i32) {
    %c0_i32 = arith.constant 0 : i32
    %c0_i32_0 = arith.constant 0 : i32
    %c0_i32_1 = arith.constant 0 : i32
    return %c0_i32, %c0_i32_0 : i32, i32
  }
  func.func @transform_7(%arg0: i32) -> (i32, i32) {
    %c0_i32 = arith.constant 0 : i32
    %c0_i32_0 = arith.constant 0 : i32
    %c0_i32_1 = arith.constant 0 : i32
    return %c0_i32, %c0_i32_0 : i32, i32
  }
  func.func @transform_8(%arg0: i32) -> (i32, i32) {
    %c0_i32 = arith.constant 0 : i32
    %c0_i32_0 = arith.constant 0 : i32
    %c0_i32_1 = arith.constant 0 : i32
    return %c0_i32, %c0_i32_0 : i32, i32
  }
  func.func @transform_9(%arg0: i32) -> (i32, i32) {
    %c0_i32 = arith.constant 0 : i32
    %c0_i32_0 = arith.constant 0 : i32
    return %arg0, %c0_i32 : i32, i32
  }
}

</mosaic_0001>

<llo_original>
// kernel: tpu_custom_call.1
$region0: #{tpu_custom_call.1}
  #allocation0 [shape = 'u32[]', space=smem, size = 0x4, offset = 0x4, fixed_abs, tag = 'smem constant byte address 0x4 - core index']
  #allocation1 [shape = 'u32[72,128]{1,0:T(1,128)}', space=vmem, size = 0x9000, scoped, tag = 'internal scratch']
  #allocation2 [shape = 'f32[1,1]{1,0:T(1,128)S(1)}', space=vmem, size = 0x200, scoped, tag = 'scoped memory for tpu_custom_call.1']
  %s0 = inlined_call_operand.vmem [shape: bf16[8,32], index: 0, kind: input, shape index: {}]
  %s1 = inlined_call_operand.vmem [shape: bf16[8,32], index: 1, kind: input, shape index: {}]
  %s2 = inlined_call_operand.vmem [shape: bf16[32,128], index: 2, kind: input, shape index: {}]
  %s3 = inlined_call_operand.vmem [shape: bf16[32,128], index: 3, kind: input, shape index: {}]
  %s4 = inlined_call_operand.vmem [shape: f32[1,128], index: 4, kind: input, shape index: {}]
  %s5 = inlined_call_operand.vmem [shape: bf16[128,64], index: 5, kind: input, shape index: {}]
  %s6 = inlined_call_operand.vmem [shape: f32[1,64], index: 6, kind: input, shape index: {}]
  %s7 = inlined_call_operand.vmem [shape: f32[1,64], index: 7, kind: input, shape index: {}]
  %s8 = inlined_call_operand.<no memory space> [shape: f32[1,1], index: 8, kind: input, shape index: {}]
  %s9 = inlined_call_operand.vmem [shape: f32[8,1], index: 9, kind: output, shape index: {}]
  %s10 = sld [smem:[#allocation0]]
  $region46: #{tpu_custom_call.1} parent=0
    _
  %s12 = ssub.s32 1, %s10
  %s13 = scalar_select 0, %s12, %s10
  %v14 = vstv %s8
  %15 = vst [vmem:[#allocation2] sm:$0x1] %v14
  // Predicated region
  $region2: #{tpu_custom_call.1} parent=0 // pred_check
    _
  $region3: #{tpu_custom_call.1} parent=0 // pred_check_branch
    %17 = sbr.rel (0) target = $region5
  $region4: #{tpu_custom_call.1} parent=0 // pred_region
    _
  $region5: #{tpu_custom_call.1} parent=0 // pred_fallthru
    _
  // Predicated region
  $region6: #{tpu_custom_call.1} parent=0 // pred_check
    _
  $region7: #{tpu_custom_call.1} parent=0 // pred_check_branch
    %19 = sbr.rel (0) target = $region9
  $region8: #{tpu_custom_call.1} parent=0 // pred_region
    _
  $region9: #{tpu_custom_call.1} parent=0 // pred_fallthru
    _
  // Predicated region
  $region10: #{tpu_custom_call.1} parent=0 // pred_check
    _
  $region11: #{tpu_custom_call.1} parent=0 // pred_check_branch
    %21 = sbr.rel (0) target = $region13
  $region12: #{tpu_custom_call.1} parent=0 // pred_region
    _
  $region13: #{tpu_custom_call.1} parent=0 // pred_fallthru
    _
  // Predicated region
  $region14: #{tpu_custom_call.1} parent=0 // pred_check
    _
  $region15: #{tpu_custom_call.1} parent=0 // pred_check_branch
    %23 = sbr.rel (0) target = $region17
  $region16: #{tpu_custom_call.1} parent=0 // pred_region
    _
  $region17: #{tpu_custom_call.1} parent=0 // pred_fallthru
    _
  // Predicated region
  $region18: #{tpu_custom_call.1} parent=0 // pred_check
    _
  $region19: #{tpu_custom_call.1} parent=0 // pred_check_branch
    %25 = sbr.rel (0) target = $region21
  $region20: #{tpu_custom_call.1} parent=0 // pred_region
    _
  $region21: #{tpu_custom_call.1} parent=0 // pred_fallthru
    _
  // Predicated region
  $region22: #{tpu_custom_call.1} parent=0 // pred_check
    _
  $region23: #{tpu_custom_call.1} parent=0 // pred_check_branch
    %27 = sbr.rel (0) target = $region25
  $region24: #{tpu_custom_call.1} parent=0 // pred_region
    _
  $region25: #{tpu_custom_call.1} parent=0 // pred_fallthru
    _
  // Predicated region
  $region26: #{tpu_custom_call.1} parent=0 // pred_check
    _
  $region27: #{tpu_custom_call.1} parent=0 // pred_check_branch
    %29 = sbr.rel (0) target = $region29
  $region28: #{tpu_custom_call.1} parent=0 // pred_region
    _
  $region29: #{tpu_custom_call.1} parent=0 // pred_fallthru
    _
  // Predicated region
  $region30: #{tpu_custom_call.1} parent=0 // pred_check
    _
  $region31: #{tpu_custom_call.1} parent=0 // pred_check_branch
    %31 = sbr.rel (0) target = $region33
  $region32: #{tpu_custom_call.1} parent=0 // pred_region
    _
  $region33: #{tpu_custom_call.1} parent=0 // pred_fallthru
    _
  // Predicated region
  $region34: #{tpu_custom_call.1} parent=0 // pred_check
    _
  $region35: #{tpu_custom_call.1} parent=0 // pred_check_branch
    %33 = sbr.rel (0) target = $region37
  $region36: #{tpu_custom_call.1} parent=0 // pred_region
    _
  $region37: #{tpu_custom_call.1} parent=0 // pred_fallthru
    _
  %v35 = vld [vmem:[%s0] sm:$0xf]
  %v36 = vld [vmem:[%s2] sm:$0xf]
  %v37 = vld [vmem:[%s2 + $0x4] sm:$0xf]
  %v38 = vld [vmem:[%s2 + $0x8] sm:$0xf]
  %v39 = vld [vmem:[%s2 + $0xc] sm:$0xf]
  %v40 = vld [vmem:[%s1] sm:$0xf]
  %v41 = vld [vmem:[%s3] sm:$0xf]
  %v42 = vld [vmem:[%s3 + $0x4] sm:$0xf]
  %v43 = vld [vmem:[%s3 + $0x8] sm:$0xf]
  %v44 = vld [vmem:[%s3 + $0xc] sm:$0xf]
  %v49 = vunpack.c.l.b16 %v41
  %v50 = vunpack.c.l.b16 %v42
  %v51 = vunpack.c.l.b16 %v43
  %v52 = vunpack.c.l.b16 %v44
  %v53 = vpack.c.b16 %v50, %v49
  %v54 = vpack.c.b16 %v52, %v51
  %vm57 = vcmask 261120
  %v59 = vsel %vm57, %v40, 0
  %61 = vmatpush.bf16.msra.mxu0 0
  %62 = vmatpush.bf16.msra.mxu0 0
  %63 = vmatpush.bf16.msra.mxu0 0
  %64 = vmatpush.bf16.msra.mxu0 0
  %65 = vmatpush.bf16.msra.mxu0 0
  %66 = vmatpush.bf16.msra.mxu0 0
  %67 = vmatpush.bf16.msra.mxu0 %v54
  %68 = vmatpush.bf16.msra.mxu0 %v53
  %69 = vmatmul.bf16.gmra.mxu0 %v59
  %v70 = vpop.f32.mrf.mxu0
  %v71 = vadd.f32 0.0, %v70
  %v72 = vpop.f32.mrf.mxu0
  %73 = vdwg.mxu0
  %v78 = vunpack.c.l.b16 %v36
  %v79 = vunpack.c.l.b16 %v37
  %v80 = vunpack.c.l.b16 %v38
  %v81 = vunpack.c.l.b16 %v39
  %v82 = vpack.c.b16 %v79, %v78
  %v83 = vpack.c.b16 %v81, %v80
  %v87 = vsel %vm57, %v35, 0
  %89 = vmatpush.bf16.msra.mxu0 0
  %90 = vmatpush.bf16.msra.mxu0 0
  %91 = vmatpush.bf16.msra.mxu0 0
  %92 = vmatpush.bf16.msra.mxu0 0
  %93 = vmatpush.bf16.msra.mxu0 0
  %94 = vmatpush.bf16.msra.mxu0 0
  %95 = vmatpush.bf16.msra.mxu0 %v83
  %96 = vmatpush.bf16.msra.mxu0 %v82
  %97 = vmatmul.bf16.gmra.mxu0 %v87
  %v98 = vpop.f32.mrf.mxu0
  %v99 = vadd.f32 %v71, %v98
  %v100 = vpop.f32.mrf.mxu0
  %101 = vdwg.mxu0
  %v102 = vld [vmem:[%s4] sm:$0x1]
  %v104 = vperm.slane %v102, 0
  %v106 = vadd.f32 %v99, %v104
  %v107 = vmax.f32 %v106, 0.0
  %v108 = vpack.c.bf16 %v107, %v107
  %v109 = vld [vmem:[%s5] sm:$0xf]
  %v110 = vld [vmem:[%s5 + $0x4] sm:$0xf]
  %v111 = vld [vmem:[%s5 + $0x8] sm:$0xf]
  %v112 = vld [vmem:[%s5 + $0xc] sm:$0xf]
  %v113 = vld [vmem:[%s5 + $0x10] sm:$0xf]
  %v114 = vld [vmem:[%s5 + $0x14] sm:$0xf]
  %v115 = vld [vmem:[%s5 + $0x18] sm:$0xf]
  %v116 = vld [vmem:[%s5 + $0x1c] sm:$0xf]
  %v117 = vld [vmem:[%s5 + $0x20] sm:$0xf]
  %v118 = vld [vmem:[%s5 + $0x24] sm:$0xf]
  %v119 = vld [vmem:[%s5 + $0x28] sm:$0xf]
  %v120 = vld [vmem:[%s5 + $0x2c] sm:$0xf]
  %v121 = vld [vmem:[%s5 + $0x30] sm:$0xf]
  %v122 = vld [vmem:[%s5 + $0x34] sm:$0xf]
  %v123 = vld [vmem:[%s5 + $0x38] sm:$0xf]
  %v124 = vld [vmem:[%s5 + $0x3c] sm:$0xf]
  %v125 = vld [vmem:[%s6] sm:$0x1]
  %v127 = vperm.slane %v125, 0
  %v145 = vunpack.c.l.b16 %v109
  %v146 = vunpack.c.l.b16 %v110
  %v147 = vunpack.c.l.b16 %v111
  %v148 = vunpack.c.l.b16 %v112
  %v149 = vunpack.c.l.b16 %v113
  %v150 = vunpack.c.l.b16 %v114
  %v151 = vunpack.c.l.b16 %v115
  %v152 = vunpack.c.l.b16 %v116
  %v153 = vunpack.c.l.b16 %v117
  %v154 = vunpack.c.l.b16 %v118
  %v155 = vunpack.c.l.b16 %v119
  %v156 = vunpack.c.l.b16 %v120
  %v157 = vunpack.c.l.b16 %v121
  %v158 = vunpack.c.l.b16 %v122
  %v159 = vunpack.c.l.b16 %v123
  %v160 = vunpack.c.l.b16 %v124
  %v161 = vpack.c.b16 %v146, %v145
  %v162 = vpack.c.b16 %v148, %v147
  %v163 = vpack.c.b16 %v150, %v149
  %v164 = vpack.c.b16 %v152, %v151
  %v165 = vpack.c.b16 %v154, %v153
  %v166 = vpack.c.b16 %v156, %v155
  %v167 = vpack.c.b16 %v158, %v157
  %v168 = vpack.c.b16 %v160, %v159
  %177 = vmatpush.bf16.msra.mxu0 %v168
  %178 = vmatpush.bf16.msra.mxu0 %v167
  %179 = vmatpush.bf16.msra.mxu0 %v166
  %180 = vmatpush.bf16.msra.mxu0 %v165
  %181 = vmatpush.bf16.msra.mxu0 %v164
  %182 = vmatpush.bf16.msra.mxu0 %v163
  %183 = vmatpush.bf16.msra.mxu0 %v162
  %184 = vmatpush.bf16.msra.mxu0 %v161
  %185 = vmatmul.bf16.gmra.mxu0 %v108
  %v186 = vpop.f32.mrf.mxu0
  %v187 = vadd.f32 %v127, %v186
  %v188 = vpop.f32.mrf.mxu0
  %189 = vdwg.mxu0
  %v190 = vmax.f32 %v187, 0.0
  %v191 = vld [vmem:[%s7] sm:$0x1]
  %v193 = vperm.slane %v191, 0
  %v195 = vmul.f32 %v190, %v193
  %vm196 = vcmask 523264
  %v197 = vsel %vm196, %v195, 0.0
  %198 = vadd.xlane.f32.xlu0 %v197
  %v199 = vpop.xlane.xlu0 %198
  %v200 = vld [vmem:[#allocation2] sm:$0x1]
  %v202 = vperm.slane %v200, 0
  %v204 = vadd.f32 %v199, %v202
  %v205 = vxor.u32 %v204, 2147483648
  %v206 = vmul.f32 %v205, 1.442695
  %v207 = vpow.pop %v206
  %v208 = vadd.f32 %v207, 1.0
  %v209 = vrcp.pop %v208
  %v210 = vmul.f32 %v208, %v209
  %v211 = vsub.f32 1.0, %v210
  %v212 = vmul.f32 %v209, %v211
  %v213 = vadd.f32 %v209, %v212
  %vm214 = vweird.f32 %v208
  %vm215 = vweird.f32 %v209
  %vm216 = vmor %vm214, %vm215
  %v217 = vsel %vm216, %v209, %v213
  %v218 = vand.u32 2147483647, %v208
  %vm219 = vcmp.eq.f32.partialorder %v218, 8.507059e+37
  %v220 = vand.u32 %v208, 2147483648
  %v221 = vor.u32 1.1754944e-38, %v220
  %v222 = vsel %vm219, %v221, %v217
  %v223 = vmul.f32 1.0, %v222
  %vm224 = vcmask 7168
  %225 = vst.msk [vmem:[%s9] sm:$0xff] %vm224, %v223
  // Predicated region
  $region38: #{tpu_custom_call.1} parent=0 // pred_check
    _
  $region39: #{tpu_custom_call.1} parent=0 // pred_check_branch
    %227 = sbr.rel (0) target = $region41
  $region40: #{tpu_custom_call.1} parent=0 // pred_region
    _
  $region41: #{tpu_custom_call.1} parent=0 // pred_fallthru
    _
  // Predicated region
  $region42: #{tpu_custom_call.1} parent=0 // pred_check
    _
  $region43: #{tpu_custom_call.1} parent=0 // pred_check_branch
    %229 = sbr.rel (0) target = $region45
  $region44: #{tpu_custom_call.1} parent=0 // pred_region
    _
  $region45: #{tpu_custom_call.1} parent=0 // pred_fallthru
    _

</llo_original>
